<compile_context>
chip_gen: v5e
topology: v5e:2x2
jax: 0.10.0
libtpu: 0.0.40
codegen_flags: <defaults>
</compile_context>

<pallas_src>
import functools

import jax
import jax.numpy as jnp
from jax.experimental import pallas as pl
from jax.experimental.pallas import tpu as pltpu


# ---------------------------------------------------------------------------
# Tiling constants / helpers
# ---------------------------------------------------------------------------

_LANE = 1024          # lane-dense width (multiple of 128)
_TR = 512             # rows per tile (multiple of 8)

_COMPILER_PARAMS = pltpu.CompilerParams(
    dimension_semantics=("parallel",),
    vmem_limit_bytes=32 * 1024 * 1024,
)


def _round_up(a, b):
    return -(-a // b) * b


def _lane_dense(x):
    """Flatten an arbitrary-shaped array to a (rows, lane) lane-dense 2-D view.

    lane is a multiple of 128 (<= _LANE); the tail is zero-padded.  Returns the
    2-D view plus the original element count (for un-padding).
    """
    flat = x.reshape(-1)
    n = flat.shape[0]
    lane = min(_LANE, _round_up(n, 128))
    n_pad = _round_up(n, lane)
    if n_pad != n:
        flat = jnp.pad(flat, (0, n_pad - n))
    return flat.reshape(n_pad // lane, lane), n


def _row_tile(rows):
    """Pick a row-tile size satisfying the (8,128) block constraint."""
    return rows if rows <= _TR else _TR


# ---------------------------------------------------------------------------
# Kernels
# ---------------------------------------------------------------------------

def _draw_and_apply_kernel(x_ref, bits_ref, mask_ref, y_ref, *, threshold, inv_keep):
    """Bernoulli(keep_prob)/keep_prob mask from uint32 bits, then y = mask * x."""
    keep = bits_ref[...] < jnp.uint32(threshold)          # integer-threshold Bernoulli
    mask = jnp.where(keep, inv_keep, 0.0).astype(mask_ref.dtype)
    mask_ref[...] = mask
    y_ref[...] = (mask * x_ref[...]).astype(y_ref.dtype)


def _apply_kernel(mask_ref, x_ref, y_ref):
    """Reuse a cached mask: y = mask * x (elementwise, VPU)."""
    y_ref[...] = (mask_ref[...] * x_ref[...]).astype(y_ref.dtype)


# ---------------------------------------------------------------------------
# pallas_call wrappers (row-tiled, double-buffered)
# ---------------------------------------------------------------------------

def _draw_and_apply(x2d, bits2d, keep_prob):
    rows, cols = x2d.shape
    tr = _row_tile(rows)
    grid = (pl.cdiv(rows, tr),)
    threshold = min(int(keep_prob * (1 << 32)), (1 << 32) - 1)
    kernel = functools.partial(
        _draw_and_apply_kernel, threshold=threshold, inv_keep=1.0 / keep_prob
    )
    mask, y = pl.pallas_call(
        kernel,
        out_shape=(
            jax.ShapeDtypeStruct((rows, cols), x2d.dtype),   # mask (input dtype)
            jax.ShapeDtypeStruct((rows, cols), x2d.dtype),   # masked input
        ),
        grid=grid,
        in_specs=[
            pl.BlockSpec((tr, cols), lambda i: (i, 0)),      # x
            pl.BlockSpec((tr, cols), lambda i: (i, 0)),      # random bits
        ],
        out_specs=(
            pl.BlockSpec((tr, cols), lambda i: (i, 0)),      # mask
            pl.BlockSpec((tr, cols), lambda i: (i, 0)),      # y
        ),
        compiler_params=_COMPILER_PARAMS,
    )(x2d, bits2d)
    return mask, y


def _apply(mask2d, x2d):
    rows, cols = x2d.shape
    tr = _row_tile(rows)
    grid = (pl.cdiv(rows, tr),)
    return pl.pallas_call(
        _apply_kernel,
        out_shape=jax.ShapeDtypeStruct((rows, cols), x2d.dtype),
        grid=grid,
        in_specs=[
            pl.BlockSpec((tr, cols), lambda i: (i, 0)),
            pl.BlockSpec((tr, cols), lambda i: (i, 0)),
        ],
        out_specs=pl.BlockSpec((tr, cols), lambda i: (i, 0)),
        compiler_params=_COMPILER_PARAMS,
    )(mask2d, x2d)


# ---------------------------------------------------------------------------
# Module-like wrapper (mask state + training flag live in Python, like nn.Module)
# ---------------------------------------------------------------------------

class FixMaskDropout:
    def __init__(self, dropout=0.5, seed=0):
        if not (0.0 <= float(dropout) < 1.0):
            raise ValueError("dropout must be in [0, 1); dropout=1 gives 1/(1-p)=inf")
        self.dropout = float(dropout)
        self.mask = None              # cached lane-dense 2-D mask (input dtype)
        self.training = True
        self._key = jax.random.PRNGKey(seed)

    def __call__(self, draw_mask, x):
        # NOTE: draw_mask is a Python bool (module-level control flow, as in the
        # PyTorch reference); it must not be a traced value.
        if not self.training:
            return x
        keep_prob = 1.0 - self.dropout
        orig_shape = x.shape
        x2d, n = _lane_dense(x)

        redraw = (
            self.mask is None
            or bool(draw_mask)
            or self.mask.shape != x2d.shape
            or self.mask.dtype != x2d.dtype
        )
        if redraw:
            self._key, sub = jax.random.split(self._key)
            bits2d = jax.random.bits(sub, x2d.shape, dtype=jnp.uint32)
            mask2d, y2d = _draw_and_apply(x2d, bits2d, keep_prob)
            self.mask = mask2d
        else:
            y2d = _apply(self.mask, x2d)

        return y2d.reshape(-1)[:n].reshape(orig_shape)

    def mask_view(self, shape):
        """Return the cached mask reshaped to `shape` (for inspection)."""
        n = 1
        for d in shape:
            n *= d
        return self.mask.reshape(-1)[:n].reshape(shape)


# ---------------------------------------------------------------------------
# Demo
# ---------------------------------------------------------------------------

if __name__ == "__main__":
    key = jax.random.PRNGKey(0)
    B, S, H = 2, 8, 32
    x = jax.random.normal(key, (B, S, H), dtype=jnp.float32)

    drop = FixMaskDropout(dropout=0.5)

    # Draw a fresh mask and apply it.
    y1 = drop(True, x)
    jax.block_until_ready(y1)

    # Reuse the cached mask (draw_mask=False) -> identical masking pattern.
    y2 = drop(False, x)
    jax.block_until_ready(y2)
    assert jnp.allclose(y1, y2), "mask reuse path mismatch"

    # Sanity: every mask entry is either 0 or 1/(1-p) = 2, and y = mask * x.
    mask = drop.mask_view((B, S, H))
    assert jnp.all((mask == 0.0) | (mask == 2.0)), "mask values must be 0 or 1/(1-p)"
    assert jnp.allclose(y1, mask * x)

    # Statistical sanity: keep rate should be near keep_prob on this small draw.
    keep_rate = float(jnp.mean((mask != 0.0).astype(jnp.float32)))
    assert 0.25 < keep_rate < 0.75, f"unexpected keep rate {keep_rate}"

    # Eval mode: identity.
    drop.training = False
    y_eval = drop(True, x)
    jax.block_until_ready(y_eval)
    assert jnp.allclose(y_eval, x)

    print("KERNEL_OK")
</pallas_src>

<mosaic_0001>
module attributes {stable_mosaic.version = 11 : i64} {
  func.func @_draw_and_apply_kernel(%arg0: i32, %arg1: memref<1x512xf32, #tpu.memory_space<vmem>>, %arg2: memref<1x512xi32, #tpu.memory_space<vmem>>, %arg3: memref<1x512xf32, #tpu.memory_space<vmem>>, %arg4: memref<1x512xf32, #tpu.memory_space<vmem>>) attributes {dimension_semantics = [#tpu.dimension_semantics<parallel>], iteration_bounds = array<i64: 1>, scalar_prefetch = 0 : i64, scratch_operands = 0 : i64, tpu.core_type = #tpu.core_type<tc>, window_params = [{transform_indices = @transform_0, window_bounds = array<i64: 1, 512>}, {transform_indices = @transform_1, window_bounds = array<i64: 1, 512>}, {transform_indices = @transform_2, window_bounds = array<i64: 1, 512>}, {transform_indices = @transform_3, window_bounds = array<i64: 1, 512>}]} {
    %c0 = arith.constant 0 : index
    %c0_0 = arith.constant 0 : index
    %0 = vector.load %arg2[%c0, %c0_0] : memref<1x512xi32, #tpu.memory_space<vmem>>, vector<1x512xi32>
    %c-2147483648_i32 = arith.constant -2147483648 : i32
    %1 = vector.broadcast %c-2147483648_i32 : i32 to vector<1x512xi32>
    %2 = arith.cmpi ult, %0, %1 : vector<1x512xi32>
    %cst = arith.constant 2.000000e+00 : f32
    %cst_1 = arith.constant 0.000000e+00 : f32
    %3 = vector.broadcast %cst : f32 to vector<1x512xf32>
    %4 = vector.broadcast %cst_1 : f32 to vector<1x512xf32>
    %5 = arith.select %2, %3, %4 : vector<1x512xi1>, vector<1x512xf32>
    %c0_2 = arith.constant 0 : index
    %c0_3 = arith.constant 0 : index
    %6 = vector.load %arg3[%c0_2, %c0_3] : memref<1x512xf32, #tpu.memory_space<vmem>>, vector<1x512xf32>
    tpu.vector_store %arg3[%c0_2, %c0_3], %5 {strides = array<i32>} : memref<1x512xf32, #tpu.memory_space<vmem>>, vector<1x512xf32>,
    %c0_4 = arith.constant 0 : index
    %c0_5 = arith.constant 0 : index
    %7 = vector.load %arg1[%c0_4, %c0_5] : memref<1x512xf32, #tpu.memory_space<vmem>>, vector<1x512xf32>
    %8 = arith.mulf %5, %7 : vector<1x512xf32>
    %c0_6 = arith.constant 0 : index
    %c0_7 = arith.constant 0 : index
    %9 = vector.load %arg4[%c0_6, %c0_7] : memref<1x512xf32, #tpu.memory_space<vmem>>, vector<1x512xf32>
    tpu.vector_store %arg4[%c0_6, %c0_7], %8 {strides = array<i32>} : memref<1x512xf32, #tpu.memory_space<vmem>>, vector<1x512xf32>,
    return
  }
  func.func @transform_0(%arg0: i32) -> (i32, i32) {
    %c0_i32 = arith.constant 0 : i32
    %c0_i32_0 = arith.constant 0 : i32
    return %arg0, %c0_i32 : i32, i32
  }
  func.func @transform_1(%arg0: i32) -> (i32, i32) {
    %c0_i32 = arith.constant 0 : i32
    %c0_i32_0 = arith.constant 0 : i32
    return %arg0, %c0_i32 : i32, i32
  }
  func.func @transform_2(%arg0: i32) -> (i32, i32) {
    %c0_i32 = arith.constant 0 : i32
    %c0_i32_0 = arith.constant 0 : i32
    return %arg0, %c0_i32 : i32, i32
  }
  func.func @transform_3(%arg0: i32) -> (i32, i32) {
    %c0_i32 = arith.constant 0 : i32
    %c0_i32_0 = arith.constant 0 : i32
    return %arg0, %c0_i32 : i32, i32
  }
}

</mosaic_0001>

<llo_original>
// kernel: tpu_custom_call.1
$region0: #{tpu_custom_call.1}
  #allocation0 [shape = 'u32[]', space=smem, size = 0x4, offset = 0x4, fixed_abs, tag = 'smem constant byte address 0x4 - core index']
  #allocation1 [shape = 'u32[72,128]{1,0:T(1,128)}', space=vmem, size = 0x9000, scoped, tag = 'internal scratch']
  %s0 = inlined_call_operand.hbm [shape: f32[1,512], index: 0, kind: input, shape index: {}]
  %s1 = inlined_call_operand.hbm [shape: u32[1,512], index: 1, kind: input, shape index: {}]
  %s2 = inlined_call_operand.hbm [shape: f32[1,512], index: 2, kind: output, shape index: {0}]
  %s3 = inlined_call_operand.hbm [shape: f32[1,512], index: 3, kind: output, shape index: {1}]
  %4 = xla_tuple %s2, %s3
  %s5 = sld [smem:[#allocation0]]
  $region34: #{tpu_custom_call.1} parent=0
    _
  %s7 = ssub.s32 1, %s5
  %s8 = scalar_select 0, %s7, %s5
  $region1: #{tpu_custom_call.1} parent=0
    #allocation2 [shape = 'u8[2048]{0}', space=vmem, size = 0x800, scoped, tag = 'input window, operand 0, single buffered']
    #allocation3 [shape = 's32[1]{0}', space=sflag, size = 0x4, scoped, tag = 'scoped memory for tpu_custom_call.1']
    #allocation4 [shape = 's32[1]{0}', space=sflag, size = 0x4, scoped, tag = 'scoped memory for tpu_custom_call.1']
    #allocation5 [shape = 'u8[2048]{0}', space=vmem, size = 0x800, scoped, tag = 'input window, operand 1, single buffered']
    #allocation6 [shape = 's32[1]{0}', space=sflag, size = 0x4, scoped, tag = 'scoped memory for tpu_custom_call.1']
    #allocation7 [shape = 'u8[2048]{0}', space=vmem, size = 0x800, scoped, tag = 'output window, operand 0, single buffered']
    #allocation8 [shape = 'u8[2048]{0}', space=vmem, size = 0x800, scoped, tag = 'output window, operand 1, single buffered']
    #allocation9 [shape = 's32[1]{0}', space=sflag, size = 0x4, scoped, tag = 'scoped memory for tpu_custom_call.1']
    %9 = vsyncpa [#allocation3], 0
    %10 = vsyncpa [#allocation6], 0
    %11 = vsyncpa [#allocation4], 0
    %12 = vsyncpa [#allocation9], 0
    // Predicated region
    $region2: #{tpu_custom_call.1} parent=1 // pred_check
      _
    $region3: #{tpu_custom_call.1} parent=1 // pred_check_branch
      %14 = sbr.rel (0) target = $region5
    $region4: #{tpu_custom_call.1} parent=1 // pred_region
      %16 = vsyncadd [#allocation3], 0
      %s18 = sshll.u32 %s0, 4
      %s19 = int_to_ptr.hbm [resolvable:$true] %s18
      %s20 = sshll.u32 [#allocation2], 4
      %s21 = int_to_ptr.vmem [resolvable:$true] %s20
      %23 = dma.hbm_to_vmem [thread:$0]  %s19, 64, %s21, [#allocation3]
    $region5: #{tpu_custom_call.1} parent=1 // pred_fallthru
      _
    // Predicated region
    $region6: #{tpu_custom_call.1} parent=1 // pred_check
      _
    $region7: #{tpu_custom_call.1} parent=1 // pred_check_branch
      %25 = sbr.rel (0) target = $region9
    $region8: #{tpu_custom_call.1} parent=1 // pred_region
      %27 = vsyncadd [#allocation6], 0
      %s29 = sshll.u32 %s1, 4
      %s30 = int_to_ptr.hbm [resolvable:$true] %s29
      %s31 = sshll.u32 [#allocation5], 4
      %s32 = int_to_ptr.vmem [resolvable:$true] %s31
      %34 = dma.hbm_to_vmem [thread:$0]  %s30, 64, %s32, [#allocation6]
    $region9: #{tpu_custom_call.1} parent=1 // pred_fallthru
      _
    // Predicated region
    $region10: #{tpu_custom_call.1} parent=1 // pred_check
      _
    $region11: #{tpu_custom_call.1} parent=1 // pred_check_branch
      %36 = sbr.rel (0) target = $region13
    $region12: #{tpu_custom_call.1} parent=1 // pred_region
      %38 = dma.done [#allocation3], 64
    $region13: #{tpu_custom_call.1} parent=1 // pred_fallthru
      _
    // Predicated region
    $region14: #{tpu_custom_call.1} parent=1 // pred_check
      _
    $region15: #{tpu_custom_call.1} parent=1 // pred_check_branch
      %40 = sbr.rel (0) target = $region17
    $region16: #{tpu_custom_call.1} parent=1 // pred_region
      %42 = dma.done [#allocation6], 64
    $region17: #{tpu_custom_call.1} parent=1 // pred_fallthru
      _
    %v43 = vld [vmem:[#allocation5] sm:$0xf]
    %v44 = vadd.s32 %v43, 2147483648
    %vm46 = vcmp.lt.s32.totalorder %v44, 0
    %v47 = vsel %vm46, 2.0, 0.0
    %v48 = vlaneseq
    %vm49 = vcmp.ge.s32.totalorder %v48, 0
    %vm50 = vcmp.lt.s32.totalorder %v48, 512
    %vm51 = vmand %vm49, %vm50
    %52 = vst.msk [vmem:[#allocation7] sm:$0xf] %vm51, %v47
    %v53 = vld [vmem:[#allocation2] sm:$0xf]
    %v54 = vmul.f32 %v47, %v53
    %55 = vst.msk [vmem:[#allocation8] sm:$0xf] %vm51, %v54
    // Predicated region
    $region18: #{tpu_custom_call.1} parent=1 // pred_check
      _
    $region19: #{tpu_custom_call.1} parent=1 // pred_check_branch
      %57 = sbr.rel (0) target = $region21
    $region20: #{tpu_custom_call.1} parent=1 // pred_region
      %59 = vsyncadd [#allocation4], 0
      %s61 = sshll.u32 [#allocation7], 4
      %s62 = int_to_ptr.vmem [resolvable:$true] %s61
      %s63 = sshll.u32 %s2, 4
      %s64 = int_to_ptr.hbm [resolvable:$true] %s63
      %66 = dma.vmem_to_hbm [thread:$0]  %s62, 64, %s64, [#allocation4]
    $region21: #{tpu_custom_call.1} parent=1 // pred_fallthru
      _
    // Predicated region
    $region22: #{tpu_custom_call.1} parent=1 // pred_check
      _
    $region23: #{tpu_custom_call.1} parent=1 // pred_check_branch
      %68 = sbr.rel (0) target = $region25
    $region24: #{tpu_custom_call.1} parent=1 // pred_region
      %70 = vsyncadd [#allocation9], 0
      %s72 = sshll.u32 [#allocation8], 4
      %s73 = int_to_ptr.vmem [resolvable:$true] %s72
      %s74 = sshll.u32 %s3, 4
      %s75 = int_to_ptr.hbm [resolvable:$true] %s74
      %77 = dma.vmem_to_hbm [thread:$0]  %s73, 64, %s75, [#allocation9]
    $region25: #{tpu_custom_call.1} parent=1 // pred_fallthru
      _
    // Predicated region
    $region26: #{tpu_custom_call.1} parent=1 // pred_check
      _
    $region27: #{tpu_custom_call.1} parent=1 // pred_check_branch
      %79 = sbr.rel (0) target = $region29
    $region28: #{tpu_custom_call.1} parent=1 // pred_region
      %81 = dma.done [#allocation4], 64
    $region29: #{tpu_custom_call.1} parent=1 // pred_fallthru
      _
    // Predicated region
    $region30: #{tpu_custom_call.1} parent=1 // pred_check
      _
    $region31: #{tpu_custom_call.1} parent=1 // pred_check_branch
      %83 = sbr.rel (0) target = $region33
    $region32: #{tpu_custom_call.1} parent=1 // pred_region
      %85 = dma.done [#allocation9], 64
    $region33: #{tpu_custom_call.1} parent=1 // pred_fallthru
      _
    %86 = vsyncpa [#allocation3], 1
    %87 = vsyncpa [#allocation6], 1
    %88 = vsyncpa [#allocation4], 1
    %89 = vsyncpa [#allocation9], 1

</llo_original>
